<compile_context>
chip_gen: v7x
topology: tpu7x:2x2x1
jax: 0.10.0
libtpu: 0.0.40
codegen_flags: <defaults>
</compile_context>

<pallas_src>
import functools
import math

import jax
import jax.numpy as jnp
from jax.experimental import pallas as pl
from jax.experimental.pallas import tpu as pltpu

PAD_ID = 3
_SUB = 8      # sublane count of one f32 vreg tile
_LANE = 128   # lane count


def _ceil_to(a, m):
    return -(-a // m) * m


def _label_smoothing_kernel(x_ref, tgt_ref, out_ref, *, size, smoothing, vocab_tile):
    """One (row_tile, vocab_tile) block of the KL-div label-smoothing sum.

    x_ref   : (RT, TV)  log-probs (any float dtype; cast to f32 in-kernel)
    tgt_ref : (RT, 1)   int32 target class ids
    out_ref : (8, 128)  f32 per-row-tile partial sum, replicated across the
              block.  Its block index depends only on the row-tile grid axis,
              so it stays resident across the vocab ("arbitrary", inner) axis.
    """
    j = pl.program_id(1)

    base = float(smoothing) / float(size - 2)
    conf = 1.0 - float(smoothing)
    # sum_t t*log(t) of the smoothed target distribution of a non-PAD row is a
    # trace-time constant: conf*log(conf) + (size-2)*base*log(base).
    ent = 0.0
    if conf > 0.0:
        ent += conf * math.log(conf)
    if base > 0.0:
        ent += (size - 2) * base * math.log(base)

    x = x_ref[...].astype(jnp.float32)               # (RT, TV) f32
    tgt = tgt_ref[...]                               # (RT, 1)  i32
    row_ok = (tgt != PAD_ID).astype(jnp.float32)     # (RT, 1)  0/1

    # Per-row sum over this vocab chunk (padded vocab columns hold x == 0, so
    # their base weight contributes nothing).
    s_all = jnp.sum(x, axis=-1, keepdims=True)       # (RT, 1)

    # Per-row pick of x at the target column, if that column is in this chunk.
    t_local = tgt - j * vocab_tile                   # (RT, 1)
    col = jax.lax.broadcasted_iota(jnp.int32, x.shape, 1)
    s_tgt = jnp.sum(jnp.where(col == t_local, x, 0.0), axis=-1, keepdims=True)

    # cross_j = sum_r row_ok_r * (base * sum_c x_rc + (conf - base) * x_{r,tgt_r})
    crow = jnp.float32(base) * s_all + jnp.float32(conf - base) * s_tgt
    cross = jnp.sum(row_ok * crow)

    @pl.when(j == 0)
    def _():
        # Initialize the resident accumulator with the constant entropy term
        # plus the correction for the PAD column (always inside chunk 0),
        # which carries zero weight in the true distribution.
        nonpad = jnp.sum(row_ok)
        x_pad = x[:, PAD_ID:PAD_ID + 1]                         # (RT, 1)
        pad_corr = jnp.float32(base) * jnp.sum(row_ok * x_pad)
        out_ref[...] = jnp.zeros_like(out_ref) + (nonpad * jnp.float32(ent) + pad_corr)

    out_ref[...] = out_ref[...] - cross


def label_smoothing_loss(x, target, nwords, *, size, smoothing,
                         row_tile=None, vocab_tile=None,
                         vmem_budget_bytes=12 * 1024 * 1024):
    """Equivalent of LabelSmoothing(size, smoothing).forward(x, target, nwords)."""
    assert size > 2, "LabelSmoothing requires size > 2 (divides by size - 2)"
    assert 0 <= PAD_ID < size, "PAD_ID must be a valid class index"

    x2 = x.reshape(-1, size)                 # keep HBM dtype (bf16 stays bf16)
    tgt = target.reshape(-1).astype(jnp.int32)
    n = x2.shape[0]
    x_bytes = jnp.dtype(x2.dtype).itemsize

    # ---- vocab (lane) tiling ------------------------------------------------
    if vocab_tile is None:
        tv = size if size <= 4096 else 2048
    else:
        tv = int(vocab_tile)
    if tv != size:
        assert tv % _LANE == 0, "vocab_tile must be a multiple of 128"
        size_pad = _ceil_to(size, tv)
    else:
        size_pad = size
    nv = size_pad // tv
    assert tv > PAD_ID, "PAD column must live in vocab chunk 0"

    # ---- row (sublane) tiling: biggest block inside the VMEM budget ---------
    if row_tile is None:
        # per-row cost: x double-buffer + ~4 live f32 (RT, TV) temporaries
        per_row = tv * (2 * x_bytes + 4 * 4)
        rt = (vmem_budget_bytes // per_row) // 16 * 16
        rt = max(16, min(rt, 4096))
        rt = min(rt, max(16, _ceil_to(n, 16)))   # don't over-pad tiny inputs
    else:
        rt = int(row_tile)
    assert rt % 16 == 0, "row_tile must be a multiple of 16 (bf16 sublane packing)"

    n_pad = _ceil_to(n, rt)
    if n_pad != n or size_pad != size:
        x2 = jnp.pad(x2, ((0, n_pad - n), (0, size_pad - size)))
    if n_pad != n:
        # padded rows get target = PAD_ID so they contribute exactly zero
        tgt = jnp.pad(tgt, (0, n_pad - n), constant_values=PAD_ID)
    tgt2 = tgt[:, None]
    n_row_tiles = n_pad // rt

    kernel = functools.partial(
        _label_smoothing_kernel, size=size, smoothing=smoothing, vocab_tile=tv)

    # Explicit scoped-VMEM limit (v5e defaults to only 16 MiB): x double-buffer
    # + f32 temporaries + small tgt/out blocks + margin, capped well under the
    # 64 MiB physical VMEM of v7x.
    vmem_est = (2 * rt * tv * x_bytes + 4 * rt * tv * 4
                + 2 * rt * 4 + 2 * _SUB * _LANE * 4)
    vmem_limit = max(16 << 20, min(vmem_est + (8 << 20), 48 << 20))

    cost = pl.CostEstimate(
        flops=5 * n_pad * size_pad,
        transcendentals=0,
        bytes_accessed=n_pad * size_pad * x_bytes + n_pad * 4
                       + n_row_tiles * _SUB * _LANE * 4)

    out = pl.pallas_call(
        kernel,
        out_shape=jax.ShapeDtypeStruct((n_row_tiles * _SUB, _LANE), jnp.float32),
        grid_spec=pltpu.PrefetchScalarGridSpec(
            num_scalar_prefetch=0,
            grid=(n_row_tiles, nv),
            in_specs=[
                pl.BlockSpec((rt, tv), lambda i, j: (i, j)),
                pl.BlockSpec((rt, 1), lambda i, j: (i, 0)),
            ],
            out_specs=pl.BlockSpec((_SUB, _LANE), lambda i, j: (i, 0)),
        ),
        compiler_params=pltpu.CompilerParams(
            dimension_semantics=("parallel", "arbitrary"),
            vmem_limit_bytes=int(vmem_limit)),
        cost_estimate=cost,
    )(x2, tgt2)

    # Each row-tile's partial is replicated across its (8,128) block; take one
    # element per tile and reduce in f32 on the host-side HLO.
    partials = out.reshape(n_row_tiles, _SUB, _LANE)[:, 0, 0]
    return jnp.sum(partials) / jnp.asarray(nwords, jnp.float32)


def _reference(x, target, nwords, *, size, smoothing):
    """Pure-JAX reference of the PyTorch forward (for verification)."""
    x2 = x.reshape(-1, size).astype(jnp.float32)
    tgt = target.reshape(-1).astype(jnp.int32)
    col = jnp.arange(size)[None, :]
    td = jnp.where(col == tgt[:, None], 1.0 - smoothing, smoothing / (size - 2))
    td = jnp.where(col == PAD_ID, 0.0, td)
    td = jnp.where(tgt[:, None] == PAD_ID, 0.0, td)
    kl = jnp.where(td > 0, td * (jnp.log(jnp.where(td > 0, td, 1.0)) - x2), 0.0)
    return jnp.sum(kl) / jnp.asarray(nwords, jnp.float32)


if __name__ == "__main__":
    key = jax.random.PRNGKey(0)
    smoothing = 0.1

    # ---- test 1: small vocab, f32, single vocab chunk -----------------------
    batch, seq, size = 2, 8, 32
    k1, k2, k3 = jax.random.split(key, 3)
    logits = jax.random.normal(k1, (batch, seq, size), dtype=jnp.float32)
    x = jax.nn.log_softmax(logits, axis=-1)          # model output: log-probs
    target = jax.random.randint(k2, (batch, seq), 0, size, dtype=jnp.int32)
    target = target.at[:, -2:].set(PAD_ID)           # sprinkle PAD tokens
    nwords = jnp.sum(target != PAD_ID).astype(jnp.float32)

    loss = label_smoothing_loss(x, target, nwords, size=size, smoothing=smoothing)
    loss = jax.block_until_ready(loss)
    ref = _reference(x, target, nwords, size=size, smoothing=smoothing)
    assert jnp.allclose(loss, ref, atol=1e-4, rtol=1e-4), (loss, ref)

    # ---- test 2: bf16 log-probs in HBM + multi-chunk vocab tiling path ------
    size2 = 300
    logits2 = jax.random.normal(k3, (batch, seq, size2), dtype=jnp.float32)
    x_bf16 = jax.nn.log_softmax(logits2, axis=-1).astype(jnp.bfloat16)
    target2 = jax.random.randint(k2, (batch, seq), 0, size2, dtype=jnp.int32)
    target2 = target2.at[:, -2:].set(PAD_ID)
    nwords2 = jnp.sum(target2 != PAD_ID).astype(jnp.float32)

    loss2 = label_smoothing_loss(x_bf16, target2, nwords2, size=size2,
                                 smoothing=smoothing, vocab_tile=128)
    loss2 = jax.block_until_ready(loss2)
    ref2 = _reference(x_bf16.astype(jnp.float32), target2, nwords2,
                      size=size2, smoothing=smoothing)
    assert jnp.allclose(loss2, ref2, atol=2e-3, rtol=2e-3), (loss2, ref2)

    print("KERNEL_OK")
</pallas_src>

<mosaic_0001>
module attributes {stable_mosaic.version = 11 : i64} {
  func.func @_label_smoothing_kernel(%arg0: i32, %arg1: i32, %arg2: memref<16x32xf32, #tpu.memory_space<vmem>>, %arg3: memref<16x1xi32, #tpu.memory_space<vmem>>, %arg4: memref<8x128xf32, #tpu.memory_space<vmem>>) attributes {dimension_semantics = [#tpu.dimension_semantics<parallel>, #tpu.dimension_semantics<arbitrary>], iteration_bounds = array<i64: 1, 1>, scalar_prefetch = 0 : i64, scratch_operands = 0 : i64, tpu.core_type = #tpu.core_type<tc>, window_params = [{transform_indices = @transform_0, window_bounds = array<i64: 16, 32>}, {transform_indices = @transform_1, window_bounds = array<i64: 16, 1>}, {transform_indices = @transform_2, window_bounds = array<i64: 8, 128>}]} {
    %c0 = arith.constant 0 : index
    %c0_0 = arith.constant 0 : index
    %0 = vector.load %arg2[%c0, %c0_0] : memref<16x32xf32, #tpu.memory_space<vmem>>, vector<16x32xf32>
    %c0_1 = arith.constant 0 : index
    %c0_2 = arith.constant 0 : index
    %1 = vector.load %arg3[%c0_1, %c0_2] : memref<16x1xi32, #tpu.memory_space<vmem>>, vector<16x1xi32>
    %c3_i32 = arith.constant 3 : i32
    %2 = vector.broadcast %c3_i32 : i32 to vector<16x1xi32>
    %3 = arith.cmpi ne, %1, %2 : vector<16x1xi32>
    %4 = arith.extui %3 : vector<16x1xi1> to vector<16x1xi32>
    %5 = arith.sitofp %4 : vector<16x1xi32> to vector<16x1xf32>
    %cst = arith.constant dense<0.000000e+00> : vector<16xf32>
    %6 = vector.multi_reduction <add>, %0, %cst [1] : vector<16x32xf32> to vector<16xf32>
    %7 = vector.shape_cast %6 : vector<16xf32> to vector<16x1xf32>
    %c32_i32 = arith.constant 32 : i32
    %8 = arith.muli %arg1, %c32_i32 : i32
    %9 = vector.broadcast %8 : i32 to vector<16x1xi32>
    %10 = arith.subi %1, %9 : vector<16x1xi32>
    %11 = tpu.iota {dimensions = array<i32: 1>} : vector<16x32xi32>
    %12 = vector.broadcast %10 : vector<16x1xi32> to vector<16x32xi32>
    %13 = arith.cmpi eq, %11, %12 : vector<16x32xi32>
    %cst_3 = arith.constant 0.000000e+00 : f32
    %14 = vector.broadcast %cst_3 : f32 to vector<16x32xf32>
    %15 = arith.select %13, %0, %14 : vector<16x32xi1>, vector<16x32xf32>
    %cst_4 = arith.constant dense<0.000000e+00> : vector<16xf32>
    %16 = vector.multi_reduction <add>, %15, %cst_4 [1] : vector<16x32xf32> to vector<16xf32>
    %17 = vector.shape_cast %16 : vector<16xf32> to vector<16x1xf32>
    %cst_5 = arith.constant 0.00333333341 : f32
    %18 = vector.broadcast %cst_5 : f32 to vector<16x1xf32>
    %19 = arith.mulf %18, %7 : vector<16x1xf32>
    %cst_6 = arith.constant 0.896666646 : f32
    %20 = vector.broadcast %cst_6 : f32 to vector<16x1xf32>
    %21 = arith.mulf %20, %17 : vector<16x1xf32>
    %22 = arith.addf %19, %21 : vector<16x1xf32>
    %23 = arith.mulf %5, %22 : vector<16x1xf32>
    %24 = vector.shape_cast %23 : vector<16x1xf32> to vector<1x16x1xf32>
    %cst_7 = arith.constant dense<0.000000e+00> : vector<1xf32>
    %25 = vector.multi_reduction <add>, %24, %cst_7 [1, 2] : vector<1x16x1xf32> to vector<1xf32>
    %26 = vector.shape_cast %25 : vector<1xf32> to vector<1x1x1xf32>
    %27 = vector.extract %26[0, 0, 0] : f32 from vector<1x1x1xf32>
    %c0_i32 = arith.constant 0 : i32
    %28 = arith.cmpi eq, %arg1, %c0_i32 : i32
    %29 = arith.extui %28 : i1 to i32
    %c0_i32_8 = arith.constant 0 : i32
    %30 = arith.cmpi ne, %29, %c0_i32_8 : i32
    scf.if %30 {
      %35 = vector.shape_cast %5 : vector<16x1xf32> to vector<1x16x1xf32>
      %cst_13 = arith.constant dense<0.000000e+00> : vector<1xf32>
      %36 = vector.multi_reduction <add>, %35, %cst_13 [1, 2] : vector<1x16x1xf32> to vector<1xf32>
      %37 = vector.shape_cast %36 : vector<1xf32> to vector<1x1x1xf32>
      %38 = vector.extract %37[0, 0, 0] : f32 from vector<1x1x1xf32>
      %39 = vector.extract_strided_slice %0 {offsets = [0, 3], sizes = [16, 1], strides = [1, 1]} : vector<16x32xf32> to vector<16x1xf32>
      %40 = arith.mulf %5, %39 : vector<16x1xf32>
      %41 = vector.shape_cast %40 : vector<16x1xf32> to vector<1x16x1xf32>
      %cst_14 = arith.constant dense<0.000000e+00> : vector<1xf32>
      %42 = vector.multi_reduction <add>, %41, %cst_14 [1, 2] : vector<1x16x1xf32> to vector<1xf32>
      %43 = vector.shape_cast %42 : vector<1xf32> to vector<1x1x1xf32>
      %44 = vector.extract %43[0, 0, 0] : f32 from vector<1x1x1xf32>
      %cst_15 = arith.constant 0.00333333341 : f32
      %45 = arith.mulf %cst_15, %44 : f32
      %cst_16 = arith.constant 0.000000e+00 : f32
      %46 = vector.broadcast %cst_16 : f32 to vector<8x128xf32>
      %cst_17 = arith.constant -0.665202737 : f32
      %47 = arith.mulf %38, %cst_17 : f32
      %48 = arith.addf %47, %45 : f32
      %49 = vector.broadcast %48 : f32 to vector<8x128xf32>
      %50 = arith.addf %46, %49 : vector<8x128xf32>
      %c0_18 = arith.constant 0 : index
      %c0_19 = arith.constant 0 : index
      %51 = vector.load %arg4[%c0_18, %c0_19] : memref<8x128xf32, #tpu.memory_space<vmem>>, vector<8x128xf32>
      tpu.vector_store %arg4[%c0_18, %c0_19], %50 {strides = array<i32>} : memref<8x128xf32, #tpu.memory_space<vmem>>, vector<8x128xf32>,
    } else {
    }
    %c0_9 = arith.constant 0 : index
    %c0_10 = arith.constant 0 : index
    %31 = vector.load %arg4[%c0_9, %c0_10] : memref<8x128xf32, #tpu.memory_space<vmem>>, vector<8x128xf32>
    %32 = vector.broadcast %27 : f32 to vector<8x128xf32>
    %33 = arith.subf %31, %32 : vector<8x128xf32>
    %c0_11 = arith.constant 0 : index
    %c0_12 = arith.constant 0 : index
    %34 = vector.load %arg4[%c0_11, %c0_12] : memref<8x128xf32, #tpu.memory_space<vmem>>, vector<8x128xf32>
    tpu.vector_store %arg4[%c0_11, %c0_12], %33 {strides = array<i32>} : memref<8x128xf32, #tpu.memory_space<vmem>>, vector<8x128xf32>,
    return
  }
  func.func @transform_0(%arg0: i32, %arg1: i32) -> (i32, i32) {
    %c0_i32 = arith.constant 0 : i32
    return %arg0, %arg1 : i32, i32
  }
  func.func @transform_1(%arg0: i32, %arg1: i32) -> (i32, i32) {
    %c0_i32 = arith.constant 0 : i32
    %c0_i32_0 = arith.constant 0 : i32
    return %arg0, %c0_i32 : i32, i32
  }
  func.func @transform_2(%arg0: i32, %arg1: i32) -> (i32, i32) {
    %c0_i32 = arith.constant 0 : i32
    %c0_i32_0 = arith.constant 0 : i32
    return %arg0, %c0_i32 : i32, i32
  }
}

</mosaic_0001>

<llo_original>
// kernel: tpu_custom_call.1
$region0: #{tpu_custom_call.1}
  #allocation0 [shape = 'u32[]', space=smem, size = 0x4, offset = 0x4, fixed_abs, tag = 'smem constant byte address 0x4 - core index']
  #allocation1 [shape = 'u32[144,128]{1,0:T(1,128)}', space=vmem, size = 0x12000, scoped, tag = 'internal scratch']
  %s0 = inlined_call_operand.vmem [shape: f32[16,32], index: 0, kind: input, shape index: {}]
  %s1 = inlined_call_operand.vmem [shape: s32[16,1], index: 1, kind: input, shape index: {}]
  %s2 = inlined_call_operand.hbm [shape: f32[8,128], index: 2, kind: output, shape index: {}]
  %s3 = sld [smem:[#allocation0]]
  $region22: #{tpu_custom_call.1} parent=0
    _
  %s5 = ssub.s32 1, %s3
  %s6 = scalar_select 0, %s5, %s3
  $region1: #{tpu_custom_call.1} parent=0
    #allocation2 [shape = 'u8[4096]{0}', space=vmem, size = 0x1000, scoped, tag = 'output window, operand 0, single buffered']
    #allocation3 [shape = 's32[1]{0}', space=sflag, size = 0x4, scoped, tag = 'scoped memory for tpu_custom_call.1']
    %7 = vsyncpa [#allocation3], 0
    // Predicated region
    $region2: #{tpu_custom_call.1} parent=1 // pred_check
      _
    $region3: #{tpu_custom_call.1} parent=1 // pred_check_branch
      %9 = sbr.rel (0) target = $region5
    $region4: #{tpu_custom_call.1} parent=1 // pred_region
      _
    $region5: #{tpu_custom_call.1} parent=1 // pred_fallthru
      _
    // Predicated region
    $region6: #{tpu_custom_call.1} parent=1 // pred_check
      _
    $region7: #{tpu_custom_call.1} parent=1 // pred_check_branch
      %11 = sbr.rel (0) target = $region9
    $region8: #{tpu_custom_call.1} parent=1 // pred_region
      _
    $region9: #{tpu_custom_call.1} parent=1 // pred_fallthru
      _
    %v12 = vld [vmem:[%s0] sm:$0xff]
    %v13 = vld [vmem:[%s0 + $0x8] sm:$0xff]
    %v14 = vld [vmem:[%s1] sm:$0xff]
    %v15 = vld [vmem:[%s1 + $0x8] sm:$0xff]
    %vm16 = vcmp.ne.s32.totalorder %v14, 3
    %vm17 = vcmp.ne.s32.totalorder %v15, 3
    %v18 = vsel %vm16, 1, 0
    %v19 = vsel %vm17, 1, 0
    %v20 = vcvt.s32.f32 %v18
    %v21 = vcvt.s32.f32 %v19
    %vm22 = vcmask 261120
    %v23 = vsel %vm22, %v12, 0.0
    %24 = vadd.xlane.f32.xlu0 %v23
    %v25 = vpop.xlane.xlu0 %24
    %v26 = vsel %vm22, %v13, 0.0
    %27 = vadd.xlane.f32.xlu0 %v26
    %v28 = vpop.xlane.xlu0 %27
    %s29 = smul.u32 0, 32
    %v30 = vstv %s29
    %v31 = vsub.s32 %v14, %v30
    %v32 = vsub.s32 %v15, %v30
    %v33 = vlaneseq
    %v34 = vand.u32 %v33, 127
    %35 = vset.pattern.permute.xlu0 0
    %36 = vperm.xlu0 %35, %v31
    %v37 = vpop.permute.xlu0 %36
    %38 = vset.pattern.permute.xlu0 0
    %39 = vperm.xlu0 %38, %v32
    %v40 = vpop.permute.xlu0 %39
    %vm41 = vcmp.eq.s32.totalorder %v34, %v37
    %vm42 = vcmp.eq.s32.totalorder %v34, %v40
    %v43 = vsel %vm41, %v12, 0.0
    %v44 = vsel %vm42, %v13, 0.0
    %v45 = vsel %vm22, %v43, 0.0
    %46 = vadd.xlane.f32.xlu0 %v45
    %v47 = vpop.xlane.xlu0 %46
    %v48 = vsel %vm22, %v44, 0.0
    %49 = vadd.xlane.f32.xlu0 %v48
    %v50 = vpop.xlane.xlu0 %49
    %v51 = vmul.f32 %v25, 0.0033333334
    %v52 = vmul.f32 %v28, 0.0033333334
    %v53 = vmul.f32 %v47, 0.89666665
    %v54 = vmul.f32 %v50, 0.89666665
    %v55 = vadd.f32 %v51, %v53
    %v56 = vadd.f32 %v52, %v54
    %v57 = vmul.f32 %v20, %v55
    %v58 = vmul.f32 %v21, %v56
    %vm59 = vcmask 7168
    %v60 = vsel %vm59, %v57, 0.0
    %v61 = vsel %vm59, %v58, 0.0
    %v62 = vadd.f32 %v60, %v61
    %63 = vadd.xlane.f32.xlu0 %v62
    %v64 = vpop.xlane.xlu0 %63
    %v65 = vrot.slane %v64, 4
    %v66 = vadd.f32 %v64, %v65
    %v67 = vrot.slane %v66, 2
    %v68 = vadd.f32 %v66, %v67
    %v69 = vrot.slane %v68, 1
    %v70 = vadd.f32 %v68, %v69
    %s71 = vtos %v70
    %p72 = scmp.eq.s32.totalorder 0, 0
    // Predicated region
    $region10: #{tpu_custom_call.1} parent=1 // pred_check
      %p73 = pneg %p72
    $region11: #{tpu_custom_call.1} parent=1 // pred_check_branch
      %75 = sbr.rel (%p73) target = $region13
    $region12: #{tpu_custom_call.1} parent=1 // pred_region
      %v76 = vsel %vm59, %v20, 0.0
      %v77 = vsel %vm59, %v21, 0.0
      %v78 = vadd.f32 %v76, %v77
      %79 = vadd.xlane.f32.xlu0 %v78
      %v80 = vpop.xlane.xlu0 %79
      %v81 = vrot.slane %v80, 4
      %v82 = vadd.f32 %v80, %v81
      %v83 = vrot.slane %v82, 2
      %v84 = vadd.f32 %v82, %v83
      %v85 = vrot.slane %v84, 1
      %v86 = vadd.f32 %v84, %v85
      %s87 = vtos %v86
      %90 = vrot.lane.b32.xlu0 %v12, 125
      %v91 = vpop.permute.xlu0 %90
      %92 = vrot.lane.b32.xlu0 %v13, 125
      %v93 = vpop.permute.xlu0 %92
      %v96 = vmul.f32 %v20, %v91
      %v97 = vmul.f32 %v21, %v93
      %v98 = vsel %vm59, %v96, 0.0
      %v99 = vsel %vm59, %v97, 0.0
      %v100 = vadd.f32 %v98, %v99
      %101 = vadd.xlane.f32.xlu0 %v100
      %v102 = vpop.xlane.xlu0 %101
      %v103 = vrot.slane %v102, 4
      %v104 = vadd.f32 %v102, %v103
      %v105 = vrot.slane %v104, 2
      %v106 = vadd.f32 %v104, %v105
      %v107 = vrot.slane %v106, 1
      %v108 = vadd.f32 %v106, %v107
      %s109 = vtos %v108
      %s110 = smul.f32 %s109, 0.0033333334
      %s111 = smul.f32 %s87, -0.66520274
      %s112 = sadd.f32 %s111, %s110
      %v113 = vstv %s112
      %v114 = vadd.f32 %v113, 0.0
      %115 = vst [vmem:[#allocation2] sm:$0xff] %v114
    $region13: #{tpu_custom_call.1} parent=1 // pred_fallthru
      _
    %v116 = vld [vmem:[#allocation2] sm:$0xff]
    %v117 = vstv %s71
    %v118 = vsub.f32 %v116, %v117
    %119 = vst [vmem:[#allocation2] sm:$0xff] %v118
    // Predicated region
    $region14: #{tpu_custom_call.1} parent=1 // pred_check
      _
    $region15: #{tpu_custom_call.1} parent=1 // pred_check_branch
      %121 = sbr.rel (0) target = $region17
    $region16: #{tpu_custom_call.1} parent=1 // pred_region
      %s123 = ssub.s32 128, 128
      %124 = vsyncadd [#allocation3], %s123
      %s126 = sshll.u32 [#allocation2], 4
      %s127 = int_to_ptr.vmem [resolvable:$true] %s126
      %129 = dma.vmem_to_hbm [thread:$0]  %s127, 128, %s2, [#allocation3]
    $region17: #{tpu_custom_call.1} parent=1 // pred_fallthru
      _
    // Predicated region
    $region18: #{tpu_custom_call.1} parent=1 // pred_check
      _
    $region19: #{tpu_custom_call.1} parent=1 // pred_check_branch
      %131 = sbr.rel (0) target = $region21
    $region20: #{tpu_custom_call.1} parent=1 // pred_region
      %132 = dma.done [#allocation3], 128
    $region21: #{tpu_custom_call.1} parent=1 // pred_fallthru
      _
    %133 = vsyncpa [#allocation3], 1

</llo_original>
